<compile_context>
chip_gen: v6e
topology: v6e:2x2x1
jax: 0.10.0
libtpu: 0.0.40
codegen_flags: <defaults>
</compile_context>

<pallas_src>
import functools
from typing import Optional

import jax
import jax.numpy as jnp
from jax.experimental import pallas as pl
from jax.experimental.pallas import tpu as pltpu

LANE = 128
SUBLANE = 16  # bf16-friendly row-tile granularity


def _round_up(x: int, m: int) -> int:
    return ((x + m - 1) // m) * m


def _vmem_limit_bytes() -> int:
    """Generation-aware scoped-VMEM budget (v5e/v6e: ~96 MiB, v7x: ~48 MiB)."""
    cap = 64 * 1024 * 1024  # conservative fallback (v7x-sized physical VMEM)
    try:
        cap = int(pltpu.get_tpu_info().vmem_capacity_bytes)
    except Exception:
        pass
    return min((cap * 3) // 4, 100 * 1024 * 1024)


def _relu_mlp_kernel_resident(x_ref, w_fc_ref, b_fc_ref, w_proj_ref,
                              b_proj_ref, o_ref):
    # Weights fully resident in VMEM: whole I reduction in one shot, no scratch.
    # x_ref: (TM, Dp) bf16, w_fc_ref: (Dp, Ip) bf16, w_proj_ref: (Ip, Dp) bf16.
    h = jnp.dot(x_ref[...], w_fc_ref[...], preferred_element_type=jnp.float32)
    h = jnp.maximum(h + b_fc_ref[...], 0.0)
    out = jnp.dot(h.astype(w_proj_ref.dtype), w_proj_ref[...],
                  preferred_element_type=jnp.float32)
    o_ref[...] = (out + b_proj_ref[...]).astype(o_ref.dtype)


def _relu_mlp_kernel_chunked(x_ref, w_fc_ref, b_fc_ref, w_proj_ref, b_proj_ref,
                             o_ref, acc_ref):
    # Streaming variant: grid = (row tiles, I chunks); acc_ref is f32 VMEM.
    k = pl.program_id(1)

    @pl.when(k == 0)
    def _init():
        # Fold b_proj into the accumulator init (no epilogue add needed).
        acc_ref[...] = jnp.broadcast_to(b_proj_ref[...], acc_ref.shape)

    h = jnp.dot(x_ref[...], w_fc_ref[...], preferred_element_type=jnp.float32)
    h = jnp.maximum(h + b_fc_ref[...], 0.0)
    acc_ref[...] += jnp.dot(h.astype(w_proj_ref.dtype), w_proj_ref[...],
                            preferred_element_type=jnp.float32)

    @pl.when(k == pl.num_programs(1) - 1)
    def _finalize():
        o_ref[...] = acc_ref[...].astype(o_ref.dtype)


@functools.partial(
    jax.jit,
    static_argnames=("tm", "ti", "compute_dtype", "weights_resident"))
def relu_mlp(x, w_fc, b_fc, w_proj, b_proj, *, tm: int = 256, ti: int = 512,
             compute_dtype=jnp.bfloat16,
             weights_resident: Optional[bool] = None):
    """x: (B, T, D). w_fc: (D, I), b_fc: (I,), w_proj: (I, D), b_proj: (D,)."""
    B, T, D = x.shape
    I = w_fc.shape[1]
    M = B * T
    out_dtype = x.dtype
    cbytes = jnp.dtype(compute_dtype).itemsize
    obytes = jnp.dtype(out_dtype).itemsize

    Dp = _round_up(D, LANE)
    I128 = _round_up(I, LANE)

    # Row tile: multiple of 16 sublanes, no larger than needed; when a single
    # tile would cover all rows but M is big, split so both v7x TCs get work.
    tm = max(SUBLANE, min(tm, _round_up(M, SUBLANE)))
    tm = _round_up(tm, SUBLANE)
    if _round_up(M, tm) // tm < 2 and M >= 2 * LANE:
        tm = _round_up((M + 1) // 2, SUBLANE)
    Mp = _round_up(M, tm)
    n_row_tiles = Mp // tm

    vmem_limit = _vmem_limit_bytes()
    budget = int(vmem_limit * 0.9)

    # Resident-weight working set (conservatively assume 2 buffers per input).
    resident_bytes = (2 * tm * Dp * cbytes          # x tile
                      + 2 * tm * Dp * obytes        # out tile
                      + 4 * Dp * I128 * cbytes      # W_fc + W_proj
                      + 4 * (I128 + Dp) * 4)        # biases (f32)
    if weights_resident is None:
        weights_resident = resident_bytes <= budget

    if weights_resident:
        ti = Ip = I128
    else:
        ti = max(LANE, min(_round_up(ti, LANE), I128))

        def chunk_bytes(tm_, ti_):
            return (2 * tm_ * Dp * cbytes + 2 * tm_ * Dp * obytes
                    + 4 * Dp * ti_ * cbytes         # W_fc + W_proj chunks
                    + tm_ * Dp * 4                  # f32 accumulator scratch
                    + 4 * (ti_ + Dp) * 4)           # biases

        while chunk_bytes(tm, ti) > budget and ti > LANE:
            ti = max(LANE, _round_up(ti // 2, LANE))
        while chunk_bytes(tm, ti) > budget and tm > SUBLANE:
            tm = max(SUBLANE, _round_up(tm // 2, SUBLANE))
        Mp = _round_up(M, tm)
        n_row_tiles = Mp // tm
        Ip = _round_up(I128, ti)

    def pad2d(a, rows, cols):
        r, c = a.shape
        if r == rows and c == cols:
            return a
        return jnp.pad(a, ((0, rows - r), (0, cols - c)))

    # bf16 activations/weights (f32 accumulation on MXU); biases stay f32.
    xp = pad2d(x.reshape(M, D).astype(compute_dtype), Mp, Dp)
    w_fc_p = pad2d(w_fc.astype(compute_dtype), Dp, Ip)
    w_proj_p = pad2d(w_proj.astype(compute_dtype), Ip, Dp)
    b_fc_p = pad2d(b_fc.reshape(1, I).astype(jnp.float32), 1, Ip)
    b_proj_p = pad2d(b_proj.reshape(1, D).astype(jnp.float32), 1, Dp)

    weight_streams = 1 if weights_resident else n_row_tiles
    cost = pl.CostEstimate(
        flops=4 * Mp * Dp * Ip,  # 2*M*D*I (fc) + 2*M*I*D (proj)
        transcendentals=0,
        bytes_accessed=(Mp * Dp * (cbytes + obytes)
                        + weight_streams * 2 * Dp * Ip * cbytes
                        + (Ip + Dp) * 4),
    )

    if weights_resident:
        out2d = pl.pallas_call(
            _relu_mlp_kernel_resident,
            out_shape=jax.ShapeDtypeStruct((Mp, Dp), out_dtype),
            grid_spec=pltpu.PrefetchScalarGridSpec(
                num_scalar_prefetch=0,
                grid=(n_row_tiles,),
                in_specs=[
                    pl.BlockSpec((tm, Dp), lambda i: (i, 0)),   # x row tile
                    pl.BlockSpec((Dp, Ip), lambda i: (0, 0)),   # W_fc (resident)
                    pl.BlockSpec((1, Ip), lambda i: (0, 0)),    # b_fc (resident)
                    pl.BlockSpec((Ip, Dp), lambda i: (0, 0)),   # W_proj (resident)
                    pl.BlockSpec((1, Dp), lambda i: (0, 0)),    # b_proj (resident)
                ],
                out_specs=pl.BlockSpec((tm, Dp), lambda i: (i, 0)),
            ),
            compiler_params=pltpu.CompilerParams(
                dimension_semantics=("parallel",),
                vmem_limit_bytes=vmem_limit),
            cost_estimate=cost,
        )(xp, w_fc_p, b_fc_p, w_proj_p, b_proj_p)
    else:
        out2d = pl.pallas_call(
            _relu_mlp_kernel_chunked,
            out_shape=jax.ShapeDtypeStruct((Mp, Dp), out_dtype),
            grid_spec=pltpu.PrefetchScalarGridSpec(
                num_scalar_prefetch=0,
                grid=(n_row_tiles, Ip // ti),
                in_specs=[
                    pl.BlockSpec((tm, Dp), lambda i, k: (i, 0)),  # x row tile
                    pl.BlockSpec((Dp, ti), lambda i, k: (0, k)),  # W_fc chunk
                    pl.BlockSpec((1, ti), lambda i, k: (0, k)),   # b_fc chunk
                    pl.BlockSpec((ti, Dp), lambda i, k: (k, 0)),  # W_proj chunk
                    pl.BlockSpec((1, Dp), lambda i, k: (0, 0)),   # b_proj
                ],
                out_specs=pl.BlockSpec((tm, Dp), lambda i, k: (i, 0)),
                scratch_shapes=[pltpu.VMEM((tm, Dp), jnp.float32)],
            ),
            compiler_params=pltpu.CompilerParams(
                dimension_semantics=("parallel", "arbitrary"),
                vmem_limit_bytes=vmem_limit),
            cost_estimate=cost,
        )(xp, w_fc_p, b_fc_p, w_proj_p, b_proj_p)

    return out2d[:M, :D].reshape(B, T, D)


def _ref_mlp(x, w_fc, b_fc, w_proj, b_proj, compute_dtype=jnp.float32):
    B, T, D = x.shape
    cd = compute_dtype
    h = jnp.dot(x.reshape(-1, D).astype(cd), w_fc.astype(cd),
                preferred_element_type=jnp.float32) + b_fc.astype(jnp.float32)
    h = jnp.maximum(h, 0.0)
    out = jnp.dot(h.astype(cd), w_proj.astype(cd),
                  preferred_element_type=jnp.float32) + b_proj.astype(jnp.float32)
    return out.astype(x.dtype).reshape(B, T, D)


def _make_inputs(key, B, T, D, I):
    kx, k1, k2, k3, k4 = jax.random.split(key, 5)
    x = jax.random.normal(kx, (B, T, D), dtype=jnp.float32)
    # nn.Linear-style init, stored pre-transposed as (in_features, out_features).
    bfc = 1.0 / (D ** 0.5)
    w_fc = jax.random.uniform(k1, (D, I), jnp.float32, -bfc, bfc)
    b_fc = jax.random.uniform(k2, (I,), jnp.float32, -bfc, bfc)
    bpr = 1.0 / (I ** 0.5)
    w_proj = jax.random.uniform(k3, (I, D), jnp.float32, -bpr, bpr)
    b_proj = jax.random.uniform(k4, (D,), jnp.float32, -bpr, bpr)
    return x, w_fc, b_fc, w_proj, b_proj


if __name__ == "__main__":
    key = jax.random.PRNGKey(0)
    k_a, k_b = jax.random.split(key)

    # 1) Module-spec shapes (n_embd=32, intermediate=128): resident-weight path.
    x, w_fc, b_fc, w_proj, b_proj = _make_inputs(k_a, B=2, T=8, D=32, I=128)
    out = relu_mlp(x, w_fc, b_fc, w_proj, b_proj)
    jax.block_until_ready(out)
    ref_bf16 = _ref_mlp(x, w_fc, b_fc, w_proj, b_proj, jnp.bfloat16)
    ref_f32 = _ref_mlp(x, w_fc, b_fc, w_proj, b_proj, jnp.float32)
    assert jnp.allclose(out, ref_bf16, atol=1e-2, rtol=1e-2), "mismatch (resident)"
    assert jnp.allclose(out, ref_f32, atol=5e-2, rtol=5e-2), "mismatch vs f32 ref"

    # 2) Non-aligned shapes, forced streamed-chunk path (multi row tile,
    #    I-axis reduction with f32 accumulator).
    x, w_fc, b_fc, w_proj, b_proj = _make_inputs(k_b, B=2, T=72, D=96, I=256)
    out = relu_mlp(x, w_fc, b_fc, w_proj, b_proj, tm=128, ti=128,
                   weights_resident=False)
    jax.block_until_ready(out)
    ref_bf16 = _ref_mlp(x, w_fc, b_fc, w_proj, b_proj, jnp.bfloat16)
    ref_f32 = _ref_mlp(x, w_fc, b_fc, w_proj, b_proj, jnp.float32)
    assert jnp.allclose(out, ref_bf16, atol=1e-2, rtol=1e-2), "mismatch (chunked)"
    assert jnp.allclose(out, ref_f32, atol=5e-2, rtol=5e-2), "mismatch vs f32 ref"

    print("KERNEL_OK")
</pallas_src>

<mosaic_0001>
module attributes {stable_mosaic.version = 11 : i64} {
  func.func @_relu_mlp_kernel_resident(%arg0: i32, %arg1: memref<16x128xbf16, #tpu.memory_space<vmem>>, %arg2: memref<128x128xbf16, #tpu.memory_space<vmem>>, %arg3: memref<1x128xf32, #tpu.memory_space<vmem>>, %arg4: memref<128x128xbf16, #tpu.memory_space<vmem>>, %arg5: memref<1x128xf32, #tpu.memory_space<vmem>>, %arg6: memref<16x128xf32, #tpu.memory_space<vmem>>) attributes {dimension_semantics = [#tpu.dimension_semantics<parallel>], iteration_bounds = array<i64: 1>, scalar_prefetch = 0 : i64, scratch_operands = 0 : i64, tpu.core_type = #tpu.core_type<tc>, window_params = [{transform_indices = @transform_0, window_bounds = array<i64: 16, 128>}, {pipeline_mode = #tpu.pipeline_mode<synchronous>, transform_indices = @transform_1, window_bounds = array<i64: 128, 128>}, {pipeline_mode = #tpu.pipeline_mode<synchronous>, transform_indices = @transform_2, window_bounds = array<i64: 1, 128>}, {pipeline_mode = #tpu.pipeline_mode<synchronous>, transform_indices = @transform_3, window_bounds = array<i64: 128, 128>}, {pipeline_mode = #tpu.pipeline_mode<synchronous>, transform_indices = @transform_4, window_bounds = array<i64: 1, 128>}, {transform_indices = @transform_5, window_bounds = array<i64: 16, 128>}]} {
    %c0 = arith.constant 0 : index
    %c0_0 = arith.constant 0 : index
    %0 = vector.load %arg1[%c0, %c0_0] : memref<16x128xbf16, #tpu.memory_space<vmem>>, vector<16x128xbf16>
    %c0_1 = arith.constant 0 : index
    %c0_2 = arith.constant 0 : index
    %1 = vector.load %arg2[%c0_1, %c0_2] : memref<128x128xbf16, #tpu.memory_space<vmem>>, vector<128x128xbf16>
    %cst = arith.constant dense<0.000000e+00> : vector<16x128xf32>
    %2 = tpu.matmul %0, %1, %cst {dimension_numbers = #tpu.dot_dimension_numbers<[1], [0], [0], [1], [0, 0, 1, 1], [], []>} : vector<16x128xbf16>, vector<128x128xbf16>, vector<16x128xf32> -> vector<16x128xf32>
    %c0_3 = arith.constant 0 : index
    %c0_4 = arith.constant 0 : index
    %3 = vector.load %arg3[%c0_3, %c0_4] : memref<1x128xf32, #tpu.memory_space<vmem>>, vector<1x128xf32>
    %4 = vector.broadcast %3 : vector<1x128xf32> to vector<16x128xf32>
    %5 = arith.addf %2, %4 : vector<16x128xf32>
    %cst_5 = arith.constant 0.000000e+00 : f32
    %6 = vector.broadcast %cst_5 : f32 to vector<16x128xf32>
    %7 = arith.maximumf %5, %6 : vector<16x128xf32>
    %8 = arith.truncf %7 : vector<16x128xf32> to vector<16x128xbf16>
    %c0_6 = arith.constant 0 : index
    %c0_7 = arith.constant 0 : index
    %9 = vector.load %arg4[%c0_6, %c0_7] : memref<128x128xbf16, #tpu.memory_space<vmem>>, vector<128x128xbf16>
    %cst_8 = arith.constant dense<0.000000e+00> : vector<16x128xf32>
    %10 = tpu.matmul %8, %9, %cst_8 {dimension_numbers = #tpu.dot_dimension_numbers<[1], [0], [0], [1], [0, 0, 1, 1], [], []>} : vector<16x128xbf16>, vector<128x128xbf16>, vector<16x128xf32> -> vector<16x128xf32>
    %c0_9 = arith.constant 0 : index
    %c0_10 = arith.constant 0 : index
    %11 = vector.load %arg5[%c0_9, %c0_10] : memref<1x128xf32, #tpu.memory_space<vmem>>, vector<1x128xf32>
    %12 = vector.broadcast %11 : vector<1x128xf32> to vector<16x128xf32>
    %13 = arith.addf %10, %12 : vector<16x128xf32>
    %c0_11 = arith.constant 0 : index
    %c0_12 = arith.constant 0 : index
    %14 = vector.load %arg6[%c0_11, %c0_12] : memref<16x128xf32, #tpu.memory_space<vmem>>, vector<16x128xf32>
    tpu.vector_store %arg6[%c0_11, %c0_12], %13 {strides = array<i32>} : memref<16x128xf32, #tpu.memory_space<vmem>>, vector<16x128xf32>,
    return
  }
  func.func @transform_0(%arg0: i32) -> (i32, i32) {
    %c0_i32 = arith.constant 0 : i32
    %c0_i32_0 = arith.constant 0 : i32
    return %arg0, %c0_i32 : i32, i32
  }
  func.func @transform_1(%arg0: i32) -> (i32, i32) {
    %c0_i32 = arith.constant 0 : i32
    %c0_i32_0 = arith.constant 0 : i32
    %c0_i32_1 = arith.constant 0 : i32
    return %c0_i32, %c0_i32_0 : i32, i32
  }
  func.func @transform_2(%arg0: i32) -> (i32, i32) {
    %c0_i32 = arith.constant 0 : i32
    %c0_i32_0 = arith.constant 0 : i32
    %c0_i32_1 = arith.constant 0 : i32
    return %c0_i32, %c0_i32_0 : i32, i32
  }
  func.func @transform_3(%arg0: i32) -> (i32, i32) {
    %c0_i32 = arith.constant 0 : i32
    %c0_i32_0 = arith.constant 0 : i32
    %c0_i32_1 = arith.constant 0 : i32
    return %c0_i32, %c0_i32_0 : i32, i32
  }
  func.func @transform_4(%arg0: i32) -> (i32, i32) {
    %c0_i32 = arith.constant 0 : i32
    %c0_i32_0 = arith.constant 0 : i32
    %c0_i32_1 = arith.constant 0 : i32
    return %c0_i32, %c0_i32_0 : i32, i32
  }
  func.func @transform_5(%arg0: i32) -> (i32, i32) {
    %c0_i32 = arith.constant 0 : i32
    %c0_i32_0 = arith.constant 0 : i32
    return %arg0, %c0_i32 : i32, i32
  }
}

</mosaic_0001>

<llo_original>
// kernel: relu_mlp.1
$region0: #{relu_mlp.1}
  #allocation0 [shape = 'u32[]', space=smem, size = 0x4, offset = 0x4, fixed_abs, tag = 'smem constant byte address 0x4 - core index']
  #allocation1 [shape = 'u32[144,128]{1,0:T(1,128)}', space=vmem, size = 0x12000, scoped, tag = 'internal scratch']
  %s0 = inlined_call_operand.vmem [shape: bf16[16,128], index: 0, kind: input, shape index: {}]
  %s1 = inlined_call_operand.vmem [shape: bf16[128,128], index: 1, kind: input, shape index: {}]
  %s2 = inlined_call_operand.vmem [shape: f32[1,128], index: 2, kind: input, shape index: {}]
  %s3 = inlined_call_operand.vmem [shape: bf16[128,128], index: 3, kind: input, shape index: {}]
  %s4 = inlined_call_operand.vmem [shape: f32[1,128], index: 4, kind: input, shape index: {}]
  %s5 = inlined_call_operand.vmem [shape: f32[16,128], index: 5, kind: output, shape index: {}]
  %s6 = sld [smem:[#allocation0]]
  $region30: #{relu_mlp.1} parent=0
    _
  %s8 = ssub.s32 1, %s6
  %s9 = scalar_select 0, %s8, %s6
  // Predicated region
  $region2: #{relu_mlp.1} parent=0 // pred_check
    _
  $region3: #{relu_mlp.1} parent=0 // pred_check_branch
    %11 = sbr.rel (0) target = $region5
  $region4: #{relu_mlp.1} parent=0 // pred_region
    _
  $region5: #{relu_mlp.1} parent=0 // pred_fallthru
    _
  // Predicated region
  $region6: #{relu_mlp.1} parent=0 // pred_check
    _
  $region7: #{relu_mlp.1} parent=0 // pred_check_branch
    %13 = sbr.rel (0) target = $region9
  $region8: #{relu_mlp.1} parent=0 // pred_region
    _
  $region9: #{relu_mlp.1} parent=0 // pred_fallthru
    _
  // Predicated region
  $region10: #{relu_mlp.1} parent=0 // pred_check
    _
  $region11: #{relu_mlp.1} parent=0 // pred_check_branch
    %15 = sbr.rel (0) target = $region13
  $region12: #{relu_mlp.1} parent=0 // pred_region
    _
  $region13: #{relu_mlp.1} parent=0 // pred_fallthru
    _
  // Predicated region
  $region14: #{relu_mlp.1} parent=0 // pred_check
    _
  $region15: #{relu_mlp.1} parent=0 // pred_check_branch
    %17 = sbr.rel (0) target = $region17
  $region16: #{relu_mlp.1} parent=0 // pred_region
    _
  $region17: #{relu_mlp.1} parent=0 // pred_fallthru
    _
  // Predicated region
  $region18: #{relu_mlp.1} parent=0 // pred_check
    _
  $region19: #{relu_mlp.1} parent=0 // pred_check_branch
    %19 = sbr.rel (0) target = $region21
  $region20: #{relu_mlp.1} parent=0 // pred_region
    _
  $region21: #{relu_mlp.1} parent=0 // pred_fallthru
    _
  %v21 = vld [vmem:[%s0] sm:$0xf]
  %v22 = vld [vmem:[%s0 + $0x4] sm:$0xf]
  %v23 = vld [vmem:[%s1] sm:$0xf]
  %v24 = vld [vmem:[%s1 + $0x4] sm:$0xf]
  %v25 = vld [vmem:[%s1 + $0x8] sm:$0xf]
  %v26 = vld [vmem:[%s1 + $0xc] sm:$0xf]
  %v27 = vld [vmem:[%s1 + $0x10] sm:$0xf]
  %v28 = vld [vmem:[%s1 + $0x14] sm:$0xf]
  %v29 = vld [vmem:[%s1 + $0x18] sm:$0xf]
  %v30 = vld [vmem:[%s1 + $0x1c] sm:$0xf]
  %v31 = vld [vmem:[%s1 + $0x20] sm:$0xf]
  %v32 = vld [vmem:[%s1 + $0x24] sm:$0xf]
  %v33 = vld [vmem:[%s1 + $0x28] sm:$0xf]
  %v34 = vld [vmem:[%s1 + $0x2c] sm:$0xf]
  %v35 = vld [vmem:[%s1 + $0x30] sm:$0xf]
  %v36 = vld [vmem:[%s1 + $0x34] sm:$0xf]
  %v37 = vld [vmem:[%s1 + $0x38] sm:$0xf]
  %v38 = vld [vmem:[%s1 + $0x3c] sm:$0xf]
  %v39 = vld [vmem:[%s2] sm:$0x1]
  %v41 = vlaneseq
  %v42 = vshrl.u32 %v41, 7
  %v43 = vsub.s32 0, %v42
  %v44 = vrot.slane %v39, %v43
  %v48 = vunpack.c.l.b16 %v21
  %v49 = vunpack.c.l.b16 %v22
  %v50 = vpack.c.b16 %v49, %v48
  %v68 = vunpack.c.l.b16 %v23
  %v69 = vunpack.c.l.b16 %v24
  %v70 = vunpack.c.l.b16 %v25
  %v71 = vunpack.c.l.b16 %v26
  %v72 = vunpack.c.l.b16 %v27
  %v73 = vunpack.c.l.b16 %v28
  %v74 = vunpack.c.l.b16 %v29
  %v75 = vunpack.c.l.b16 %v30
  %v76 = vunpack.c.l.b16 %v31
  %v77 = vunpack.c.l.b16 %v32
  %v78 = vunpack.c.l.b16 %v33
  %v79 = vunpack.c.l.b16 %v34
  %v80 = vunpack.c.l.b16 %v35
  %v81 = vunpack.c.l.b16 %v36
  %v82 = vunpack.c.l.b16 %v37
  %v83 = vunpack.c.l.b16 %v38
  %v84 = vpack.c.b16 %v69, %v68
  %v85 = vpack.c.b16 %v71, %v70
  %v86 = vpack.c.b16 %v73, %v72
  %v87 = vpack.c.b16 %v75, %v74
  %v88 = vpack.c.b16 %v77, %v76
  %v89 = vpack.c.b16 %v79, %v78
  %v90 = vpack.c.b16 %v81, %v80
  %v91 = vpack.c.b16 %v83, %v82
  %100 = vmatprep.subr.bf16.mxu0 0
  %101 = vmatpush1.bf16.msra.mxu0 %v91
  %102 = vmatprep.subr.bf16.mxu0 0
  %103 = vmatpush1.bf16.msra.mxu0 %v90
  %104 = vmatprep.subr.bf16.mxu0 0
  %105 = vmatpush1.bf16.msra.mxu0 %v89
  %106 = vmatprep.subr.bf16.mxu0 0
  %107 = vmatpush1.bf16.msra.mxu0 %v88
  %108 = vmatprep.subr.bf16.mxu0 0
  %109 = vmatpush1.bf16.msra.mxu0 %v87
  %110 = vmatprep.subr.bf16.mxu0 0
  %111 = vmatpush1.bf16.msra.mxu0 %v86
  %112 = vmatprep.subr.bf16.mxu0 0
  %113 = vmatpush1.bf16.msra.mxu0 %v85
  %114 = vmatprep.subr.bf16.mxu0 0
  %115 = vmatpush1.bf16.msra.mxu0 %v84
  %116 = vmatprep.subr.bf16.mxu0 0
  %117 = vmatpush2.bf16.msra.mxu0 0
  %118 = vmatprep.subr.bf16.mxu0 0
  %119 = vmatpush2.bf16.msra.mxu0 0
  %120 = vmatprep.subr.bf16.mxu0 0
  %121 = vmatpush2.bf16.msra.mxu0 0
  %122 = vmatprep.subr.bf16.mxu0 0
  %123 = vmatpush2.bf16.msra.mxu0 0
  %124 = vmatprep.subr.bf16.mxu0 0
  %125 = vmatpush2.bf16.msra.mxu0 0
  %126 = vmatprep.subr.bf16.mxu0 0
  %127 = vmatpush2.bf16.msra.mxu0 0
  %128 = vmatprep.subr.bf16.mxu0 0
  %129 = vmatpush2.bf16.msra.mxu0 0
  %130 = vmatprep.subr.bf16.mxu0 0
  %131 = vmatpush2.bf16.msra.mxu0 0
  %132 = vmatprep.mubr.bf16.mxu0 0
  %133 = vmatmul.mubr.bf16.gmra.mxu0 %v50
  %v134 = vpop.f32.mrf.mxu0
  %v135 = vadd.f32 %v44, %v134
  %v136 = vpop.f32.mrf.mxu0
  %v137 = vpop.f32.mrf.mxu0
  %v138 = vadd.f32 %v44, %v137
  %v139 = vpop.f32.mrf.mxu0
  %140 = vdwg.mxu0
  %v141 = vmax.f32 %v135, 0.0
  %v142 = vmax.f32 %v138, 0.0
  %v143 = vpack.c.bf16 %v142, %v141
  %v144 = vld [vmem:[%s3] sm:$0xf]
  %v145 = vld [vmem:[%s3 + $0x4] sm:$0xf]
  %v146 = vld [vmem:[%s3 + $0x8] sm:$0xf]
  %v147 = vld [vmem:[%s3 + $0xc] sm:$0xf]
  %v148 = vld [vmem:[%s3 + $0x10] sm:$0xf]
  %v149 = vld [vmem:[%s3 + $0x14] sm:$0xf]
  %v150 = vld [vmem:[%s3 + $0x18] sm:$0xf]
  %v151 = vld [vmem:[%s3 + $0x1c] sm:$0xf]
  %v152 = vld [vmem:[%s3 + $0x20] sm:$0xf]
  %v153 = vld [vmem:[%s3 + $0x24] sm:$0xf]
  %v154 = vld [vmem:[%s3 + $0x28] sm:$0xf]
  %v155 = vld [vmem:[%s3 + $0x2c] sm:$0xf]
  %v156 = vld [vmem:[%s3 + $0x30] sm:$0xf]
  %v157 = vld [vmem:[%s3 + $0x34] sm:$0xf]
  %v158 = vld [vmem:[%s3 + $0x38] sm:$0xf]
  %v159 = vld [vmem:[%s3 + $0x3c] sm:$0xf]
  %v160 = vld [vmem:[%s4] sm:$0x1]
  %v162 = vlaneseq
  %v163 = vshrl.u32 %v162, 7
  %v164 = vsub.s32 0, %v163
  %v165 = vrot.slane %v160, %v164
  %v183 = vunpack.c.l.b16 %v144
  %v184 = vunpack.c.l.b16 %v145
  %v185 = vunpack.c.l.b16 %v146
  %v186 = vunpack.c.l.b16 %v147
  %v187 = vunpack.c.l.b16 %v148
  %v188 = vunpack.c.l.b16 %v149
  %v189 = vunpack.c.l.b16 %v150
  %v190 = vunpack.c.l.b16 %v151
  %v191 = vunpack.c.l.b16 %v152
  %v192 = vunpack.c.l.b16 %v153
  %v193 = vunpack.c.l.b16 %v154
  %v194 = vunpack.c.l.b16 %v155
  %v195 = vunpack.c.l.b16 %v156
  %v196 = vunpack.c.l.b16 %v157
  %v197 = vunpack.c.l.b16 %v158
  %v198 = vunpack.c.l.b16 %v159
  %v199 = vpack.c.b16 %v184, %v183
  %v200 = vpack.c.b16 %v186, %v185
  %v201 = vpack.c.b16 %v188, %v187
  %v202 = vpack.c.b16 %v190, %v189
  %v203 = vpack.c.b16 %v192, %v191
  %v204 = vpack.c.b16 %v194, %v193
  %v205 = vpack.c.b16 %v196, %v195
  %v206 = vpack.c.b16 %v198, %v197
  %215 = vmatprep.subr.bf16.mxu0 0
  %216 = vmatpush1.bf16.msra.mxu0 %v206
  %217 = vmatprep.subr.bf16.mxu0 0
  %218 = vmatpush1.bf16.msra.mxu0 %v205
  %219 = vmatprep.subr.bf16.mxu0 0
  %220 = vmatpush1.bf16.msra.mxu0 %v204
  %221 = vmatprep.subr.bf16.mxu0 0
  %222 = vmatpush1.bf16.msra.mxu0 %v203
  %223 = vmatprep.subr.bf16.mxu0 0
  %224 = vmatpush1.bf16.msra.mxu0 %v202
  %225 = vmatprep.subr.bf16.mxu0 0
  %226 = vmatpush1.bf16.msra.mxu0 %v201
  %227 = vmatprep.subr.bf16.mxu0 0
  %228 = vmatpush1.bf16.msra.mxu0 %v200
  %229 = vmatprep.subr.bf16.mxu0 0
  %230 = vmatpush1.bf16.msra.mxu0 %v199
  %231 = vmatprep.subr.bf16.mxu0 0
  %232 = vmatpush2.bf16.msra.mxu0 0
  %233 = vmatprep.subr.bf16.mxu0 0
  %234 = vmatpush2.bf16.msra.mxu0 0
  %235 = vmatprep.subr.bf16.mxu0 0
  %236 = vmatpush2.bf16.msra.mxu0 0
  %237 = vmatprep.subr.bf16.mxu0 0
  %238 = vmatpush2.bf16.msra.mxu0 0
  %239 = vmatprep.subr.bf16.mxu0 0
  %240 = vmatpush2.bf16.msra.mxu0 0
  %241 = vmatprep.subr.bf16.mxu0 0
  %242 = vmatpush2.bf16.msra.mxu0 0
  %243 = vmatprep.subr.bf16.mxu0 0
  %244 = vmatpush2.bf16.msra.mxu0 0
  %245 = vmatprep.subr.bf16.mxu0 0
  %246 = vmatpush2.bf16.msra.mxu0 0
  %247 = vmatprep.mubr.bf16.mxu0 0
  %248 = vmatmul.mubr.bf16.gmra.mxu0 %v143
  %v249 = vpop.f32.mrf.mxu0
  %v250 = vadd.f32 %v165, %v249
  %v251 = vpop.f32.mrf.mxu0
  %v252 = vpop.f32.mrf.mxu0
  %v253 = vadd.f32 %v165, %v252
  %v254 = vpop.f32.mrf.mxu0
  %255 = vdwg.mxu0
  %256 = vst [vmem:[%s5] sm:$0xff] %v250
  %257 = vst [vmem:[%s5 + $0x8] sm:$0xff] %v253
  // Predicated region
  $region22: #{relu_mlp.1} parent=0 // pred_check
    _
  $region23: #{relu_mlp.1} parent=0 // pred_check_branch
    %259 = sbr.rel (0) target = $region25
  $region24: #{relu_mlp.1} parent=0 // pred_region
    _
  $region25: #{relu_mlp.1} parent=0 // pred_fallthru
    _
  // Predicated region
  $region26: #{relu_mlp.1} parent=0 // pred_check
    _
  $region27: #{relu_mlp.1} parent=0 // pred_check_branch
    %261 = sbr.rel (0) target = $region29
  $region28: #{relu_mlp.1} parent=0 // pred_region
    _
  $region29: #{relu_mlp.1} parent=0 // pred_fallthru
    _

</llo_original>
